<compile_context>
chip_gen: v6e
topology: v6e:2x2x1
jax: 0.10.0
libtpu: 0.0.40
codegen_flags: <defaults>
</compile_context>

<pallas_src>
import functools
import math

import jax
import jax.numpy as jnp
from jax.experimental import pallas as pl
from jax.experimental.pallas import tpu as pltpu


def _cumsum_normalize_kernel(nm_ref, emb_ref, *, normalize, scale, eps):
    """Per-batch cumulative sums of not_mask (+ optional normalization).

    nm_ref:  (1, H, W)     float32 not_mask (1.0 = valid, 0.0 = padded)
    emb_ref: (1, 2, H, W)  float32 output; [0,0] = y_embed, [0,1] = x_embed
    """
    nm = nm_ref[0]                                   # (H, W)
    H, W = nm.shape

    # cumsum along H (torch dim=1) as a lower-triangular matmul on the MXU.
    rh = jax.lax.broadcasted_iota(jnp.int32, (H, H), 0)
    ch = jax.lax.broadcasted_iota(jnp.int32, (H, H), 1)
    tri_h = (rh >= ch).astype(jnp.float32)
    y_embed = jnp.dot(tri_h, nm,
                      precision=jax.lax.Precision.HIGHEST,
                      preferred_element_type=jnp.float32)

    # cumsum along W (torch dim=2) as an upper-triangular matmul.
    rw = jax.lax.broadcasted_iota(jnp.int32, (W, W), 0)
    cw = jax.lax.broadcasted_iota(jnp.int32, (W, W), 1)
    tri_w = (rw <= cw).astype(jnp.float32)
    x_embed = jnp.dot(nm, tri_w,
                      precision=jax.lax.Precision.HIGHEST,
                      preferred_element_type=jnp.float32)

    if normalize:
        # Reciprocal of the small denominator vectors, then multiply
        # (H + W divides instead of 2*H*W full-map divides).
        y_rec = (1.0 / (y_embed[H - 1:H, :] + eps)) * scale      # (1, W)
        x_rec = (1.0 / (x_embed[:, W - 1:W] + eps)) * scale      # (H, 1)
        y_embed = y_embed * y_rec
        x_embed = x_embed * x_rec

    emb_ref[0, 0, :, :] = y_embed
    emb_ref[0, 1, :, :] = x_embed


def _sine_embed_kernel(emb_ref, out_ref, *, num_pos_feats, temperature):
    """Feature-major sine embedding over one flattened-spatial tile.

    emb_ref: (1, 2, tHW)   float32; [0,0,:] = y_embed flat, [0,1,:] = x_embed flat
    out_ref: (1, 2F, tHW)  float32; rows 0:F = pos_y, rows F:2F = pos_x
    """
    F_ = num_pos_feats

    # inv_dim_t and the sin/cos phase are functions of the feature index only;
    # build them from an iota -> no tensor inputs, no per-step DMA for them.
    idx = jax.lax.broadcasted_iota(jnp.int32, (F_, 1), 0)        # (F, 1)
    half = (idx // 2).astype(jnp.float32)                        # floor(i/2)
    odd = (idx % 2).astype(jnp.float32)                          # i mod 2
    # 1 / (temperature ** (2*floor(i/2)/F))  -> multiply instead of divide.
    inv_dim_t = jnp.exp(half * (-2.0 * math.log(temperature) / F_))   # (F, 1)
    phase = odd * (math.pi / 2.0)                                # cos(v) == sin(v + pi/2)

    y = emb_ref[0, 0:1, :]                                       # (1, tHW)
    x = emb_ref[0, 1:2, :]                                       # (1, tHW)

    # Single sin per element; lane dim = tHW (>=128 or full) -> dense stores.
    out_ref[0, 0:F_, :] = jnp.sin(y * inv_dim_t + phase)
    out_ref[0, F_:2 * F_, :] = jnp.sin(x * inv_dim_t + phase)


def _pick_spatial_tile(hw, cap=2048):
    """Largest lane-aligned (multiple of 128) tile of H*W that divides hw, capped."""
    if hw <= cap:
        return hw
    t = (cap // 128) * 128
    while t >= 128:
        if hw % t == 0:
            return t
        t -= 128
    return hw   # no aligned divisor; fall back to one full-width block


def position_embedding_sine(x, mask, num_pos_feats=64, temperature=10000,
                            normalize=False, scale=None):
    """JAX/Pallas equivalent of PositionEmbeddingSine.forward.

    x:    (N, C, H, W) float32 (torch only reads its .device; unused here)
    mask: (N, H, W) bool, True = padded position
    returns pos: (N, 2*num_pos_feats, H, W) float32 (NCHW, same as torch)
    """
    del x
    if scale is not None and not normalize:
        raise ValueError('normalize should be True if scale is passed')
    if scale is None:
        scale = 2 * math.pi

    N, H, W = mask.shape
    F_ = num_pos_feats
    HW = H * W

    not_mask = jnp.logical_not(mask).astype(jnp.float32)          # (N, H, W)

    # --- kernel 1: cumsum (+ normalize) -> (N, 2, H, W) ---------------------
    emb = pl.pallas_call(
        functools.partial(_cumsum_normalize_kernel,
                          normalize=normalize, scale=float(scale), eps=1e-6),
        out_shape=jax.ShapeDtypeStruct((N, 2, H, W), jnp.float32),
        grid_spec=pltpu.PrefetchScalarGridSpec(
            num_scalar_prefetch=0,
            grid=(N,),
            in_specs=[pl.BlockSpec((1, H, W), lambda n: (n, 0, 0))],
            out_specs=pl.BlockSpec((1, 2, H, W), lambda n: (n, 0, 0, 0)),
        ),
        compiler_params=pltpu.CompilerParams(dimension_semantics=("parallel",)),
    )(not_mask)

    # Flatten spatial dims (this array is only 1/F of the output volume) so the
    # heavy kernel sees H*W as a lane-dense last dim.
    emb_flat = emb.reshape(N, 2, HW)

    t_hw = _pick_spatial_tile(HW)
    n_s = HW // t_hw

    # --- kernel 2: feature-major sine embedding -> (N, 2F, H*W) -------------
    out_flat = pl.pallas_call(
        functools.partial(_sine_embed_kernel,
                          num_pos_feats=F_, temperature=float(temperature)),
        out_shape=jax.ShapeDtypeStruct((N, 2 * F_, HW), jnp.float32),
        grid_spec=pltpu.PrefetchScalarGridSpec(
            num_scalar_prefetch=0,
            grid=(N, n_s),
            in_specs=[pl.BlockSpec((1, 2, t_hw), lambda n, s: (n, 0, s))],
            out_specs=pl.BlockSpec((1, 2 * F_, t_hw), lambda n, s: (n, 0, s)),
        ),
        compiler_params=pltpu.CompilerParams(
            dimension_semantics=("parallel", "parallel")),
    )(emb_flat)

    # (N, 2F, H*W) -> (N, 2F, H, W): plain reshape, no transpose / data shuffle.
    # TODO(synk): downstream TPU consumers that accept (N, 2F, H*W) or NHWC can
    # skip even this reshape.
    return out_flat.reshape(N, 2 * F_, H, W)


def _reference(mask, num_pos_feats, temperature, normalize, scale):
    """Pure-jnp mirror of the PyTorch forward (for validation)."""
    not_mask = jnp.logical_not(mask).astype(jnp.float32)
    y_embed = jnp.cumsum(not_mask, axis=1)
    x_embed = jnp.cumsum(not_mask, axis=2)
    if normalize:
        eps = 1e-6
        y_embed = y_embed / (y_embed[:, -1:, :] + eps) * scale
        x_embed = x_embed / (x_embed[:, :, -1:] + eps) * scale
    i = jnp.arange(num_pos_feats, dtype=jnp.float32)
    dim_t = temperature ** (2.0 * jnp.floor(i / 2.0) / num_pos_feats)
    pos_x = x_embed[..., None] / dim_t
    pos_y = y_embed[..., None] / dim_t
    N, H, W = mask.shape
    px = jnp.stack([jnp.sin(pos_x[..., 0::2]), jnp.cos(pos_x[..., 1::2])],
                   axis=4).reshape(N, H, W, num_pos_feats)
    py = jnp.stack([jnp.sin(pos_y[..., 0::2]), jnp.cos(pos_y[..., 1::2])],
                   axis=4).reshape(N, H, W, num_pos_feats)
    pos = jnp.concatenate([py, px], axis=3)
    return jnp.transpose(pos, (0, 3, 1, 2))


if __name__ == "__main__":
    key = jax.random.PRNGKey(0)
    kx, _ = jax.random.split(key)

    N, C, H, W = 2, 4, 16, 16
    F_ = 32  # num_pos_feats -> output has 2*F_ = 64 channels

    x = jax.random.normal(kx, (N, C, H, W), dtype=jnp.float32)

    # Deterministic padding-style mask (True = padded), like DETR's NestedTensor mask.
    valid_h = jnp.array([H, H - 3])
    valid_w = jnp.array([W, W - 5])
    hh = jnp.arange(H)[None, :, None]
    ww = jnp.arange(W)[None, None, :]
    mask = (hh >= valid_h[:, None, None]) | (ww >= valid_w[:, None, None])

    # normalize=False (module default)
    pos = position_embedding_sine(x, mask, num_pos_feats=F_,
                                  temperature=10000, normalize=False)
    pos = jax.block_until_ready(pos)
    ref = _reference(mask, F_, 10000, False, 2 * math.pi)
    assert pos.shape == (N, 2 * F_, H, W), pos.shape
    assert pos.dtype == jnp.float32
    assert jnp.allclose(pos, ref, atol=2e-3, rtol=2e-3), \
        float(jnp.max(jnp.abs(pos - ref)))

    # normalize=True path (exercises the reciprocal-based normalization)
    pos_n = position_embedding_sine(x, mask, num_pos_feats=F_,
                                    temperature=10000, normalize=True)
    pos_n = jax.block_until_ready(pos_n)
    ref_n = _reference(mask, F_, 10000, True, 2 * math.pi)
    assert jnp.allclose(pos_n, ref_n, atol=2e-3, rtol=2e-3), \
        float(jnp.max(jnp.abs(pos_n - ref_n)))

    print("KERNEL_OK")
</pallas_src>

<mosaic_0001>
module attributes {stable_mosaic.version = 11 : i64} {
  func.func @_cumsum_normalize_kernel(%arg0: i32, %arg1: memref<1x16x16xf32, #tpu.memory_space<vmem>>, %arg2: memref<1x2x16x16xf32, #tpu.memory_space<vmem>>) attributes {dimension_semantics = [#tpu.dimension_semantics<parallel>], iteration_bounds = array<i64: 2>, scalar_prefetch = 0 : i64, scratch_operands = 0 : i64, tpu.core_type = #tpu.core_type<tc>, window_params = [{transform_indices = @transform_0, window_bounds = array<i64: 1, 16, 16>}, {transform_indices = @transform_1, window_bounds = array<i64: 1, 2, 16, 16>}]} {
    %c0 = arith.constant 0 : index
    %c0_0 = arith.constant 0 : index
    %c0_1 = arith.constant 0 : index
    %0 = vector.load %arg1[%c0, %c0_0, %c0_1] : memref<1x16x16xf32, #tpu.memory_space<vmem>>, vector<1x16x16xf32>
    %1 = vector.shape_cast %0 : vector<1x16x16xf32> to vector<16x16xf32>
    %2 = tpu.iota {dimensions = array<i32: 0>} : vector<16x16xi32>
    %3 = tpu.iota {dimensions = array<i32: 1>} : vector<16x16xi32>
    %4 = arith.cmpi sge, %2, %3 : vector<16x16xi32>
    %5 = arith.extui %4 : vector<16x16xi1> to vector<16x16xi32>
    %6 = arith.sitofp %5 : vector<16x16xi32> to vector<16x16xf32>
    %cst = arith.constant dense<0.000000e+00> : vector<16x16xf32>
    %7 = tpu.matmul %6, %1, %cst {dimension_numbers = #tpu.dot_dimension_numbers<[1], [0], [0], [1], [0, 0, 1, 1], [], []>, precision = #tpu.contract_precision<fp32>} : vector<16x16xf32>, vector<16x16xf32>, vector<16x16xf32> -> vector<16x16xf32>
    %8 = tpu.iota {dimensions = array<i32: 0>} : vector<16x16xi32>
    %9 = tpu.iota {dimensions = array<i32: 1>} : vector<16x16xi32>
    %10 = arith.cmpi sle, %8, %9 : vector<16x16xi32>
    %11 = arith.extui %10 : vector<16x16xi1> to vector<16x16xi32>
    %12 = arith.sitofp %11 : vector<16x16xi32> to vector<16x16xf32>
    %cst_2 = arith.constant dense<0.000000e+00> : vector<16x16xf32>
    %13 = tpu.matmul %1, %12, %cst_2 {dimension_numbers = #tpu.dot_dimension_numbers<[1], [0], [0], [1], [0, 0, 1, 1], [], []>, precision = #tpu.contract_precision<fp32>} : vector<16x16xf32>, vector<16x16xf32>, vector<16x16xf32> -> vector<16x16xf32>
    %c0_3 = arith.constant 0 : index
    %c0_4 = arith.constant 0 : index
    %c0_5 = arith.constant 0 : index
    %c0_6 = arith.constant 0 : index
    %14 = vector.load %arg2[%c0_3, %c0_4, %c0_5, %c0_6] : memref<1x2x16x16xf32, #tpu.memory_space<vmem>>, vector<1x1x16x16xf32>
    %15 = vector.shape_cast %14 : vector<1x1x16x16xf32> to vector<16x16xf32>
    %16 = vector.shape_cast %7 : vector<16x16xf32> to vector<1x1x16x16xf32>
    tpu.vector_store %arg2[%c0_3, %c0_4, %c0_5, %c0_6], %16 {strides = array<i32>} : memref<1x2x16x16xf32, #tpu.memory_space<vmem>>, vector<1x1x16x16xf32>,
    %c0_7 = arith.constant 0 : index
    %c1 = arith.constant 1 : index
    %c0_8 = arith.constant 0 : index
    %c0_9 = arith.constant 0 : index
    %17 = vector.load %arg2[%c0_7, %c1, %c0_8, %c0_9] : memref<1x2x16x16xf32, #tpu.memory_space<vmem>>, vector<1x1x16x16xf32>
    %18 = vector.shape_cast %17 : vector<1x1x16x16xf32> to vector<16x16xf32>
    %19 = vector.shape_cast %13 : vector<16x16xf32> to vector<1x1x16x16xf32>
    tpu.vector_store %arg2[%c0_7, %c1, %c0_8, %c0_9], %19 {strides = array<i32>} : memref<1x2x16x16xf32, #tpu.memory_space<vmem>>, vector<1x1x16x16xf32>,
    return
  }
  func.func @transform_0(%arg0: i32) -> (i32, i32, i32) {
    %c0_i32 = arith.constant 0 : i32
    %c0_i32_0 = arith.constant 0 : i32
    %c0_i32_1 = arith.constant 0 : i32
    return %arg0, %c0_i32, %c0_i32_0 : i32, i32, i32
  }
  func.func @transform_1(%arg0: i32) -> (i32, i32, i32, i32) {
    %c0_i32 = arith.constant 0 : i32
    %c0_i32_0 = arith.constant 0 : i32
    %c0_i32_1 = arith.constant 0 : i32
    %c0_i32_2 = arith.constant 0 : i32
    return %arg0, %c0_i32, %c0_i32_0, %c0_i32_1 : i32, i32, i32, i32
  }
}

</mosaic_0001>

<llo_original>
// kernel: tpu_custom_call.1
$region0: #{tpu_custom_call.1}
  #allocation0 [shape = 'u32[]', space=smem, size = 0x4, offset = 0x4, fixed_abs, tag = 'smem constant byte address 0x4 - core index']
  #allocation1 [shape = 'u32[144,128]{1,0:T(1,128)}', space=vmem, size = 0x12000, scoped, tag = 'internal scratch']
  %s0 = inlined_call_operand.hbm [shape: f32[2,16,16], index: 0, kind: input, shape index: {}]
  %s1 = inlined_call_operand.hbm [shape: f32[2,2,16,16], index: 1, kind: output, shape index: {}]
  %s2 = sld [smem:[#allocation0]]
  $region41: #{tpu_custom_call.1} parent=0
    _
  %s4 = ssub.s32 1, %s2
  %s5 = scalar_select 0, %s4, %s2
  $region1: #{tpu_custom_call.1} parent=0
    #allocation2 [shape = 'u8[16384]{0}', space=vmem, size = 0x4000, scoped, tag = 'input window, operand 0']
    #allocation3 [shape = 's32[2]{0}', space=sflag, size = 0x8, scoped, tag = 'scoped memory for tpu_custom_call.1']
    #allocation4 [shape = 's32[2]{0}', space=sflag, size = 0x8, scoped, tag = 'scoped memory for tpu_custom_call.1']
    #allocation5 [shape = 'u8[32768]{0}', space=vmem, size = 0x8000, scoped, tag = 'output window, operand 0']
    %6 = vsyncpa [#allocation3], 0
    %s7 = scalar_lea.sflag [#allocation3], 1
    %8 = vsyncpa %s7, 0
    %9 = vsyncpa [#allocation4], 0
    %s10 = scalar_lea.sflag [#allocation4], 1
    %11 = vsyncpa %s10, 0
    loop: start=0, step=1, limit=4
    $region2: #{tpu_custom_call.1} parent=1 // loop_pre_header
      _
    $region3: #{tpu_custom_call.1} parent=1 // loop_header
      %s13 = sphi 0, %s17
      %p14 = scmp.ge.s32.totalorder %s13, 4
      %s23 = sphi 0, %s25
      %s26 = sphi 0, %s23
      %s27 = sphi 0, %s26
      %s43 = sphi 0, %s27
      %s49 = sphi 0, %s51
      %s52 = sphi 0, %s49
      %s53 = sphi 0, %s52
      %s69 = sphi 0, %s53
    $region4: #{tpu_custom_call.1} parent=1 // loop_header_branch
      %16 = sbr.rel (%p14) target = $region8
    $region5: #{tpu_custom_call.1} parent=1 // loop_body
      %s18 = ssub.s32 %s13, 1
      %s19 = ssub.s32 %s13, 2
      %s20 = sadd.s32 %s13, 1
      %s21 = ssub.s32 %s13, %s20
      %p22 = scmp.eq.s32.totalorder %s21, 0
      %s24 = sadd.s32 %s23, 1
      %s25 = scalar_select %p22, %s23, %s24
      %p28 = pneg %p22
      %p29 = scmp.eq.s32.totalorder %s13, 1
      %p30 = por %p28, %p29
      %p31 = scmp.ne.s32.totalorder %s23, %s26
      %p32 = scmp.eq.s32.totalorder %s13, 0
      %p33 = por %p31, %p32
      %p34 = scmp.ne.s32.totalorder %s23, %s26
      %p35 = scmp.eq.s32.totalorder %s18, 1
      %p36 = por %p34, %p35
      %p37 = scmp.ne.s32.totalorder %s26, %s27
      %p38 = scmp.eq.s32.totalorder %s18, 0
      %p39 = por %p37, %p38
      %p40 = scmp.ne.s32.totalorder %s26, %s27
      %p41 = scmp.eq.s32.totalorder %s19, 1
      %p42 = por %p40, %p41
      %p44 = scmp.ne.s32.totalorder %s27, %s43
      %p45 = scmp.eq.s32.totalorder %s19, 0
      %p46 = por %p44, %p45
      %s47 = ssub.s32 %s13, %s20
      %p48 = scmp.eq.s32.totalorder %s47, 0
      %s50 = sadd.s32 %s49, 1
      %s51 = scalar_select %p48, %s49, %s50
      %p54 = pneg %p48
      %p55 = scmp.eq.s32.totalorder %s13, 1
      %p56 = por %p54, %p55
      %p57 = scmp.ne.s32.totalorder %s49, %s52
      %p58 = scmp.eq.s32.totalorder %s13, 0
      %p59 = por %p57, %p58
      %p60 = scmp.ne.s32.totalorder %s49, %s52
      %p61 = scmp.eq.s32.totalorder %s18, 1
      %p62 = por %p60, %p61
      %p63 = scmp.ne.s32.totalorder %s52, %s53
      %p64 = scmp.eq.s32.totalorder %s18, 0
      %p65 = por %p63, %p64
      %p66 = scmp.ne.s32.totalorder %s52, %s53
      %p67 = scmp.eq.s32.totalorder %s19, 1
      %p68 = por %p66, %p67
      %p70 = scmp.ne.s32.totalorder %s53, %s69
      %p71 = scmp.eq.s32.totalorder %s19, 0
      %p72 = por %p70, %p71
      %p73 = scmp.le.s32.totalorder 1, %s13
      %p74 = scmp.lt.s32.totalorder %s13, 3
      %p75 = pnand %p73, %p74
      %p76 = pneg %p75
      // Predicated region
      $region9: #{tpu_custom_call.1} parent=5 // pred_check
        _
      $region10: #{tpu_custom_call.1} parent=5 // pred_check_branch
        %78 = sbr.rel (%p75) target = $region12
      $region11: #{tpu_custom_call.1} parent=5 // pred_region
        %s79 = ssub.s32 %s13, 1
      $region12: #{tpu_custom_call.1} parent=5 // pred_fallthru
        _
      %p80 = scmp.lt.s32.totalorder %s13, 2
      // Predicated region
      $region13: #{tpu_custom_call.1} parent=5 // pred_check
        %p81 = pneg %p80
      $region14: #{tpu_custom_call.1} parent=5 // pred_check_branch
        %83 = sbr.rel (%p81) target = $region16
      $region15: #{tpu_custom_call.1} parent=5 // pred_region
        // Predicated region
        $region17: #{tpu_custom_call.1} parent=15 // pred_check
          %p84 = pneg %p33
        $region18: #{tpu_custom_call.1} parent=15 // pred_check_branch
          %86 = sbr.rel (%p84) target = $region20
        $region19: #{tpu_custom_call.1} parent=15 // pred_region
          %s87 = sand.u32 %s23, 1
          %s88 = scalar_lea.sflag [#allocation3], %s87
          %s89 = sand.u32 %s23, 1
          %s90 = smul.addr %s89, 16
          %s91 = scalar_lea.vmem [#allocation2], %s90
          %s93 = ssub.s32 256, 256
          %94 = vsyncadd %s88, %s93
          %s95 = smul.addr %s13, 2
          %s96 = smul.addr %s95, 128
          %s97 = scalar_lea.hbm %s0, %s96
          %s98 = sshll.u32 %s91, 4
          %s99 = int_to_ptr.vmem [resolvable:$true] %s98
          %104 = dma.hbm_to_vmem [thread:$0]  %s97, 256, %s99, %s88, 128, 128, 8
        $region20: #{tpu_custom_call.1} parent=15 // pred_fallthru
          _
      $region16: #{tpu_custom_call.1} parent=5 // pred_fallthru
        _
      %p105 = scmp.le.s32.totalorder 1, %s13
      %p106 = scmp.lt.s32.totalorder %s13, 3
      %p107 = pnand %p105, %p106
      %p108 = pneg %p107
      // Predicated region
      $region21: #{tpu_custom_call.1} parent=5 // pred_check
        _
      $region22: #{tpu_custom_call.1} parent=5 // pred_check_branch
        %110 = sbr.rel (%p107) target = $region24
      $region23: #{tpu_custom_call.1} parent=5 // pred_region
        %s111 = ssub.s32 %s13, 1
        %s112 = sand.u32 %s26, 1
        %s113 = scalar_lea.sflag [#allocation3], %s112
        %s114 = sand.u32 %s26, 1
        %s115 = smul.addr %s114, 16
        %s116 = scalar_lea.vmem [#allocation2], %s115
        // Predicated region
        $region25: #{tpu_custom_call.1} parent=23 // pred_check
          %p117 = pneg %p39
        $region26: #{tpu_custom_call.1} parent=23 // pred_check_branch
          %119 = sbr.rel (%p117) target = $region28
        $region27: #{tpu_custom_call.1} parent=23 // pred_region
          %120 = dma.done %s113, 256
        $region28: #{tpu_custom_call.1} parent=23 // pred_fallthru
          _
        %s121 = sand.u32 %s26, 1
        %s122 = scalar_lea.sflag [#allocation3], %s121
        %s123 = sand.u32 %s26, 1
        %s124 = smul.addr %s123, 16
        %s125 = scalar_lea.vmem [#allocation2], %s124
        %p126 = pneg %p39
        %p127 = pneg %p36
        %p128 = pneg %p65
        %p129 = pneg %p62
        %s130 = sand.u32 %s52, 1
        %s131 = scalar_lea.sflag [#allocation4], %s130
        %s132 = sand.u32 %s52, 1
        %s133 = smul.addr %s132, 32
        %s134 = scalar_lea.vmem [#allocation5], %s133
        %v135 = vld [vmem:[%s116] sm:$0xff]
        %v136 = vld [vmem:[%s116 + $0x8] sm:$0xff]
        %v137 = vlaneseq
        %v138 = vshrl.u32 %v137, 7
        %v139 = vadd.s32 %v138, 8
        %v140 = vlaneseq
        %v141 = vand.u32 %v140, 127
        %vm142 = vcmp.ge.s32.totalorder %v138, %v141
        %vm143 = vcmp.ge.s32.totalorder %v139, %v141
        %v144 = vsel %vm142, 1, 0
        %v145 = vsel %vm143, 1, 0
        %v146 = vcvt.s32.f32 %v144
        %v147 = vcvt.s32.f32 %v145
        %vm148 = vcmask 130048
        %v150 = vsel %vm148, %v146, 0
        %v153 = vsel %vm148, %v147, 0
        %155 = vmatprep.subr.mxu0 0.0
        %156 = vmatpush1.msra.mxu0 0.0
        %157 = vmatprep.subr.mxu0 0.0
        %158 = vmatpush1.msra.mxu0 0.0
        %159 = vmatprep.subr.mxu0 0.0
        %160 = vmatpush1.msra.mxu0 0.0
        %161 = vmatprep.subr.mxu0 0.0
        %162 = vmatpush1.msra.mxu0 0.0
        %163 = vmatprep.subr.mxu0 0.0
        %164 = vmatpush1.msra.mxu0 0.0
        %165 = vmatprep.subr.mxu0 0.0
        %166 = vmatpush1.msra.mxu0 0.0
        %167 = vmatprep.subr.mxu0 0.0
        %168 = vmatpush1.msra.mxu0 0.0
        %169 = vmatprep.subr.mxu0 0.0
        %170 = vmatpush1.msra.mxu0 0.0
        %171 = vmatprep.subr.mxu0 0.0
        %172 = vmatpush1.msra.mxu0 0.0
        %173 = vmatprep.subr.mxu0 0.0
        %174 = vmatpush1.msra.mxu0 0.0
        %175 = vmatprep.subr.mxu0 0.0
        %176 = vmatpush1.msra.mxu0 0.0
        %177 = vmatprep.subr.mxu0 0.0
        %178 = vmatpush1.msra.mxu0 0.0
        %179 = vmatprep.subr.mxu0 0.0
        %180 = vmatpush1.msra.mxu0 0.0
        %181 = vmatprep.subr.mxu0 0.0
        %182 = vmatpush1.msra.mxu0 0.0
        %183 = vmatprep.subr.mxu0 0.0
        %v184 = vand.u32 %v136, 4294901760
        %185 = vmatpush1.msra.mxu0 %v184
        %186 = vmatprep.subr.mxu0 0.0
        %v187 = vand.u32 %v135, 4294901760
        %188 = vmatpush1.msra.mxu0 %v187
        %189 = vmatprep.subr.mxu0 0.0
        %190 = vmatpush2.msra.mxu0 0.0
        %191 = vmatprep.subr.mxu0 0.0
        %192 = vmatpush2.msra.mxu0 0.0
        %193 = vmatprep.subr.mxu0 0.0
        %194 = vmatpush2.msra.mxu0 0.0
        %195 = vmatprep.subr.mxu0 0.0
        %196 = vmatpush2.msra.mxu0 0.0
        %197 = vmatprep.subr.mxu0 0.0
        %198 = vmatpush2.msra.mxu0 0.0
        %199 = vmatprep.subr.mxu0 0.0
        %200 = vmatpush2.msra.mxu0 0.0
        %201 = vmatprep.subr.mxu0 0.0
        %202 = vmatpush2.msra.mxu0 0.0
        %203 = vmatprep.subr.mxu0 0.0
        %204 = vmatpush2.msra.mxu0 0.0
        %205 = vmatprep.subr.mxu0 0.0
        %206 = vmatpush2.msra.mxu0 0.0
        %207 = vmatprep.subr.mxu0 0.0
        %208 = vmatpush2.msra.mxu0 0.0
        %209 = vmatprep.subr.mxu0 0.0
        %210 = vmatpush2.msra.mxu0 0.0
        %211 = vmatprep.subr.mxu0 0.0
        %212 = vmatpush2.msra.mxu0 0.0
        %213 = vmatprep.subr.mxu0 0.0
        %214 = vmatpush2.msra.mxu0 0.0
        %215 = vmatprep.subr.mxu0 0.0
        %216 = vmatpush2.msra.mxu0 0.0
        %217 = vmatprep.subr.mxu0 0.0
        %218 = vmatpush2.msra.mxu0 0.0
        %219 = vmatprep.subr.mxu0 0.0
        %220 = vmatpush2.msra.mxu0 0.0
        %221 = vmatprep.mubr.f32.mxu0 0.0
        %v222 = vand.u32 %v150, 4294901760
        %v223 = vsub.f32 %v150, %v222
        %v224 = vand.u32 %v223, 4294901760
        %v225 = vsub.f32 %v223, %v224
        %v226 = vand.u32 %v225, 4294901760
        %227 = vmatmul.mubr.f32.gmra.mxu0 %v226
        %v228 = vpop.f32.mrf.mxu0
        %v229 = vadd.f32 0.0, %v228
        %v230 = vpop.f32.mrf.mxu0
        %231 = vmatprep.mubr.f32.mxu0 0.0
        %v232 = vand.u32 %v153, 4294901760
        %v233 = vsub.f32 %v153, %v232
        %v234 = vand.u32 %v233, 4294901760
        %v235 = vsub.f32 %v233, %v234
        %v236 = vand.u32 %v235, 4294901760
        %237 = vmatmul.mubr.f32.gmra.mxu0 %v236
        %v238 = vpop.f32.mrf.mxu0
        %v239 = vadd.f32 0.0, %v238
        %v240 = vpop.f32.mrf.mxu0
        %241 = vdwg.mxu0
        %242 = vmatprep.subr.mxu0 0.0
        %243 = vmatpush1.msra.mxu0 0.0
        %244 = vmatprep.subr.mxu0 0.0
        %245 = vmatpush1.msra.mxu0 0.0
        %246 = vmatprep.subr.mxu0 0.0
        %247 = vmatpush1.msra.mxu0 0.0
        %248 = vmatprep.subr.mxu0 0.0
        %249 = vmatpush1.msra.mxu0 0.0
        %250 = vmatprep.subr.mxu0 0.0
        %251 = vmatpush1.msra.mxu0 0.0
        %252 = vmatprep.subr.mxu0 0.0
        %253 = vmatpush1.msra.mxu0 0.0
        %254 = vmatprep.subr.mxu0 0.0
        %255 = vmatpush1.msra.mxu0 0.0
        %256 = vmatprep.subr.mxu0 0.0
        %257 = vmatpush1.msra.mxu0 0.0
        %258 = vmatprep.subr.mxu0 0.0
        %259 = vmatpush1.msra.mxu0 0.0
        %260 = vmatprep.subr.mxu0 0.0
        %261 = vmatpush1.msra.mxu0 0.0
        %262 = vmatprep.subr.mxu0 0.0
        %263 = vmatpush1.msra.mxu0 0.0
        %264 = vmatprep.subr.mxu0 0.0
        %265 = vmatpush1.msra.mxu0 0.0
        %266 = vmatprep.subr.mxu0 0.0
        %267 = vmatpush1.msra.mxu0 0.0
        %268 = vmatprep.subr.mxu0 0.0
        %269 = vmatpush1.msra.mxu0 0.0
        %270 = vmatprep.subr.mxu0 0.0
        %v271 = vand.u32 %v136, 4294901760
        %v272 = vsub.f32 %v136, %v271
        %v273 = vand.u32 %v272, 4294901760
        %v274 = vsub.f32 %v272, %v273
        %v275 = vand.u32 %v274, 4294901760
        %276 = vmatpush1.msra.mxu0 %v275
        %277 = vmatprep.subr.mxu0 0.0
        %v278 = vand.u32 %v135, 4294901760
        %v279 = vsub.f32 %v135, %v278
        %v280 = vand.u32 %v279, 4294901760
        %v281 = vsub.f32 %v279, %v280
        %v282 = vand.u32 %v281, 4294901760
        %283 = vmatpush1.msra.mxu0 %v282
        %284 = vmatprep.subr.mxu0 0.0
        %285 = vmatpush2.msra.mxu0 0.0
        %286 = vmatprep.subr.mxu0 0.0
        %287 = vmatpush2.msra.mxu0 0.0
        %288 = vmatprep.subr.mxu0 0.0
        %289 = vmatpush2.msra.mxu0 0.0
        %290 = vmatprep.subr.mxu0 0.0
        %291 = vmatpush2.msra.mxu0 0.0
        %292 = vmatprep.subr.mxu0 0.0
        %293 = vmatpush2.msra.mxu0 0.0
        %294 = vmatprep.subr.mxu0 0.0
        %295 = vmatpush2.msra.mxu0 0.0
        %296 = vmatprep.subr.mxu0 0.0
        %297 = vmatpush2.msra.mxu0 0.0
        %298 = vmatprep.subr.mxu0 0.0
        %299 = vmatpush2.msra.mxu0 0.0
        %300 = vmatprep.subr.mxu0 0.0
        %301 = vmatpush2.msra.mxu0 0.0
        %302 = vmatprep.subr.mxu0 0.0
        %303 = vmatpush2.msra.mxu0 0.0
        %304 = vmatprep.subr.mxu0 0.0
        %305 = vmatpush2.msra.mxu0 0.0
        %306 = vmatprep.subr.mxu0 0.0
        %307 = vmatpush2.msra.mxu0 0.0
        %308 = vmatprep.subr.mxu0 0.0
        %309 = vmatpush2.msra.mxu0 0.0
        %310 = vmatprep.subr.mxu0 0.0
        %311 = vmatpush2.msra.mxu0 0.0
        %312 = vmatprep.subr.mxu0 0.0
        %313 = vmatpush2.msra.mxu0 0.0
        %314 = vmatprep.subr.mxu0 0.0
        %315 = vmatpush2.msra.mxu0 0.0
        %316 = vmatprep.mubr.f32.mxu0 0.0
        %v317 = vand.u32 %v150, 4294901760
        %318 = vmatmul.mubr.f32.gmra.mxu0 %v317
        %v319 = vpop.f32.mrf.mxu0
        %v320 = vadd.f32 %v229, %v319
        %v321 = vpop.f32.mrf.mxu0
        %322 = vmatprep.mubr.f32.mxu0 0.0
        %v323 = vand.u32 %v153, 4294901760
        %324 = vmatmul.mubr.f32.gmra.mxu0 %v323
        %v325 = vpop.f32.mrf.mxu0
        %v326 = vadd.f32 %v239, %v325
        %v327 = vpop.f32.mrf.mxu0
        %328 = vdwg.mxu0
        %329 = vmatprep.subr.mxu0 0.0
        %330 = vmatpush1.msra.mxu0 0.0
        %331 = vmatprep.subr.mxu0 0.0
        %332 = vmatpush1.msra.mxu0 0.0
        %333 = vmatprep.subr.mxu0 0.0
        %334 = vmatpush1.msra.mxu0 0.0
        %335 = vmatprep.subr.mxu0 0.0
        %336 = vmatpush1.msra.mxu0 0.0
        %337 = vmatprep.subr.mxu0 0.0
        %338 = vmatpush1.msra.mxu0 0.0
        %339 = vmatprep.subr.mxu0 0.0
        %340 = vmatpush1.msra.mxu0 0.0
        %341 = vmatprep.subr.mxu0 0.0
        %342 = vmatpush1.msra.mxu0 0.0
        %343 = vmatprep.subr.mxu0 0.0
        %344 = vmatpush1.msra.mxu0 0.0
        %345 = vmatprep.subr.mxu0 0.0
        %346 = vmatpush1.msra.mxu0 0.0
        %347 = vmatprep.subr.mxu0 0.0
        %348 = vmatpush1.msra.mxu0 0.0
        %349 = vmatprep.subr.mxu0 0.0
        %350 = vmatpush1.msra.mxu0 0.0
        %351 = vmatprep.subr.mxu0 0.0
        %352 = vmatpush1.msra.mxu0 0.0
        %353 = vmatprep.subr.mxu0 0.0
        %354 = vmatpush1.msra.mxu0 0.0
        %355 = vmatprep.subr.mxu0 0.0
        %356 = vmatpush1.msra.mxu0 0.0
        %357 = vmatprep.subr.mxu0 0.0
        %v358 = vand.u32 %v136, 4294901760
        %v359 = vsub.f32 %v136, %v358
        %360 = vmatpush1.msra.mxu0 %v359
        %361 = vmatprep.subr.mxu0 0.0
        %v362 = vand.u32 %v135, 4294901760
        %v363 = vsub.f32 %v135, %v362
        %364 = vmatpush1.msra.mxu0 %v363
        %365 = vmatprep.subr.mxu0 0.0
        %366 = vmatpush2.msra.mxu0 0.0
        %367 = vmatprep.subr.mxu0 0.0
        %368 = vmatpush2.msra.mxu0 0.0
        %369 = vmatprep.subr.mxu0 0.0
        %370 = vmatpush2.msra.mxu0 0.0
        %371 = vmatprep.subr.mxu0 0.0
        %372 = vmatpush2.msra.mxu0 0.0
        %373 = vmatprep.subr.mxu0 0.0
        %374 = vmatpush2.msra.mxu0 0.0
        %375 = vmatprep.subr.mxu0 0.0
        %376 = vmatpush2.msra.mxu0 0.0
        %377 = vmatprep.subr.mxu0 0.0
        %378 = vmatpush2.msra.mxu0 0.0
        %379 = vmatprep.subr.mxu0 0.0
        %380 = vmatpush2.msra.mxu0 0.0
        %381 = vmatprep.subr.mxu0 0.0
        %382 = vmatpush2.msra.mxu0 0.0
        %383 = vmatprep.subr.mxu0 0.0
        %384 = vmatpush2.msra.mxu0 0.0
        %385 = vmatprep.subr.mxu0 0.0
        %386 = vmatpush2.msra.mxu0 0.0
        %387 = vmatprep.subr.mxu0 0.0
        %388 = vmatpush2.msra.mxu0 0.0
        %389 = vmatprep.subr.mxu0 0.0
        %390 = vmatpush2.msra.mxu0 0.0
        %391 = vmatprep.subr.mxu0 0.0
        %392 = vmatpush2.msra.mxu0 0.0
        %393 = vmatprep.subr.mxu0 0.0
        %394 = vmatpush2.msra.mxu0 0.0
        %395 = vmatprep.subr.mxu0 0.0
        %396 = vmatpush2.msra.mxu0 0.0
        %397 = vmatprep.mubr.f32.mxu0 0.0
        %v398 = vand.u32 %v150, 4294901760
        %v399 = vsub.f32 %v150, %v398
        %400 = vmatmul.mubr.f32.gmra.mxu0 %v399
        %v401 = vpop.f32.mrf.mxu0
        %v402 = vadd.f32 %v320, %v401
        %v403 = vpop.f32.mrf.mxu0
        %404 = vmatprep.mubr.f32.mxu0 0.0
        %v405 = vand.u32 %v153, 4294901760
        %v406 = vsub.f32 %v153, %v405
        %407 = vmatmul.mubr.f32.gmra.mxu0 %v406
        %v408 = vpop.f32.mrf.mxu0
        %v409 = vadd.f32 %v326, %v408
        %v410 = vpop.f32.mrf.mxu0
        %411 = vdwg.mxu0
        %412 = vmatprep.subr.mxu0 0.0
        %413 = vmatpush1.msra.mxu0 0.0
        %414 = vmatprep.subr.mxu0 0.0
        %415 = vmatpush1.msra.mxu0 0.0
        %416 = vmatprep.subr.mxu0 0.0
        %417 = vmatpush1.msra.mxu0 0.0
        %418 = vmatprep.subr.mxu0 0.0
        %419 = vmatpush1.msra.mxu0 0.0
        %420 = vmatprep.subr.mxu0 0.0
        %421 = vmatpush1.msra.mxu0 0.0
        %422 = vmatprep.subr.mxu0 0.0
        %423 = vmatpush1.msra.mxu0 0.0
        %424 = vmatprep.subr.mxu0 0.0
        %425 = vmatpush1.msra.mxu0 0.0
        %426 = vmatprep.subr.mxu0 0.0
        %427 = vmatpush1.msra.mxu0 0.0
        %428 = vmatprep.subr.mxu0 0.0
        %429 = vmatpush1.msra.mxu0 0.0
        %430 = vmatprep.subr.mxu0 0.0
        %431 = vmatpush1.msra.mxu0 0.0
        %432 = vmatprep.subr.mxu0 0.0
        %433 = vmatpush1.msra.mxu0 0.0
        %434 = vmatprep.subr.mxu0 0.0
        %435 = vmatpush1.msra.mxu0 0.0
        %436 = vmatprep.subr.mxu0 0.0
        %437 = vmatpush1.msra.mxu0 0.0
        %438 = vmatprep.subr.mxu0 0.0
        %439 = vmatpush1.msra.mxu0 0.0
        %440 = vmatprep.subr.mxu0 0.0
        %v441 = vand.u32 %v136, 4294901760
        %442 = vmatpush1.msra.mxu0 %v441
        %443 = vmatprep.subr.mxu0 0.0
        %v444 = vand.u32 %v135, 4294901760
        %445 = vmatpush1.msra.mxu0 %v444
        %446 = vmatprep.subr.mxu0 0.0
        %447 = vmatpush2.msra.mxu0 0.0
        %448 = vmatprep.subr.mxu0 0.0
        %449 = vmatpush2.msra.mxu0 0.0
        %450 = vmatprep.subr.mxu0 0.0
        %451 = vmatpush2.msra.mxu0 0.0
        %452 = vmatprep.subr.mxu0 0.0
        %453 = vmatpush2.msra.mxu0 0.0
        %454 = vmatprep.subr.mxu0 0.0
        %455 = vmatpush2.msra.mxu0 0.0
        %456 = vmatprep.subr.mxu0 0.0
        %457 = vmatpush2.msra.mxu0 0.0
        %458 = vmatprep.subr.mxu0 0.0
        %459 = vmatpush2.msra.mxu0 0.0
        %460 = vmatprep.subr.mxu0 0.0
        %461 = vmatpush2.msra.mxu0 0.0
        %462 = vmatprep.subr.mxu0 0.0
        %463 = vmatpush2.msra.mxu0 0.0
        %464 = vmatprep.subr.mxu0 0.0
        %465 = vmatpush2.msra.mxu0 0.0
        %466 = vmatprep.subr.mxu0 0.0
        %467 = vmatpush2.msra.mxu0 0.0
        %468 = vmatprep.subr.mxu0 0.0
        %469 = vmatpush2.msra.mxu0 0.0
        %470 = vmatprep.subr.mxu0 0.0
        %471 = vmatpush2.msra.mxu0 0.0
        %472 = vmatprep.subr.mxu0 0.0
        %473 = vmatpush2.msra.mxu0 0.0
        %474 = vmatprep.subr.mxu0 0.0
        %475 = vmatpush2.msra.mxu0 0.0
        %476 = vmatprep.subr.mxu0 0.0
        %477 = vmatpush2.msra.mxu0 0.0
        %478 = vmatprep.mubr.f32.mxu0 0.0
        %v479 = vand.u32 %v150, 4294901760
        %v480 = vsub.f32 %v150, %v479
        %v481 = vand.u32 %v480, 4294901760
        %482 = vmatmul.mubr.f32.gmra.mxu0 %v481
        %v483 = vpop.f32.mrf.mxu0
        %v484 = vadd.f32 %v402, %v483
        %v485 = vpop.f32.mrf.mxu0
        %486 = vmatprep.mubr.f32.mxu0 0.0
        %v487 = vand.u32 %v153, 4294901760
        %v488 = vsub.f32 %v153, %v487
        %v489 = vand.u32 %v488, 4294901760
        %490 = vmatmul.mubr.f32.gmra.mxu0 %v489
        %v491 = vpop.f32.mrf.mxu0
        %v492 = vadd.f32 %v409, %v491
        %v493 = vpop.f32.mrf.mxu0
        %494 = vdwg.mxu0
        %495 = vmatprep.subr.mxu0 0.0
        %496 = vmatpush1.msra.mxu0 0.0
        %497 = vmatprep.subr.mxu0 0.0
        %498 = vmatpush1.msra.mxu0 0.0
        %499 = vmatprep.subr.mxu0 0.0
        %500 = vmatpush1.msra.mxu0 0.0
        %501 = vmatprep.subr.mxu0 0.0
        %502 = vmatpush1.msra.mxu0 0.0
        %503 = vmatprep.subr.mxu0 0.0
        %504 = vmatpush1.msra.mxu0 0.0
        %505 = vmatprep.subr.mxu0 0.0
        %506 = vmatpush1.msra.mxu0 0.0
        %507 = vmatprep.subr.mxu0 0.0
        %508 = vmatpush1.msra.mxu0 0.0
        %509 = vmatprep.subr.mxu0 0.0
        %510 = vmatpush1.msra.mxu0 0.0
        %511 = vmatprep.subr.mxu0 0.0
        %512 = vmatpush1.msra.mxu0 0.0
        %513 = vmatprep.subr.mxu0 0.0
        %514 = vmatpush1.msra.mxu0 0.0
        %515 = vmatprep.subr.mxu0 0.0
        %516 = vmatpush1.msra.mxu0 0.0
        %517 = vmatprep.subr.mxu0 0.0
        %518 = vmatpush1.msra.mxu0 0.0
        %519 = vmatprep.subr.mxu0 0.0
        %520 = vmatpush1.msra.mxu0 0.0
        %521 = vmatprep.subr.mxu0 0.0
        %522 = vmatpush1.msra.mxu0 0.0
        %523 = vmatprep.subr.mxu0 0.0
        %v524 = vand.u32 %v136, 4294901760
        %v525 = vsub.f32 %v136, %v524
        %v526 = vand.u32 %v525, 4294901760
        %527 = vmatpush1.msra.mxu0 %v526
        %528 = vmatprep.subr.mxu0 0.0
        %v529 = vand.u32 %v135, 4294901760
        %v530 = vsub.f32 %v135, %v529
        %v531 = vand.u32 %v530, 4294901760
        %532 = vmatpush1.msra.mxu0 %v531
        %533 = vmatprep.subr.mxu0 0.0
        %534 = vmatpush2.msra.mxu0 0.0
        %535 = vmatprep.subr.mxu0 0.0
        %536 = vmatpush2.msra.mxu0 0.0
        %537 = vmatprep.subr.mxu0 0.0
        %538 = vmatpush2.msra.mxu0 0.0
        %539 = vmatprep.subr.mxu0 0.0
        %540 = vmatpush2.msra.mxu0 0.0
        %541 = vmatprep.subr.mxu0 0.0
        %542 = vmatpush2.msra.mxu0 0.0
        %543 = vmatprep.subr.mxu0 0.0
        %544 = vmatpush2.msra.mxu0 0.0
        %545 = vmatprep.subr.mxu0 0.0
        %546 = vmatpush2.msra.mxu0 0.0
        %547 = vmatprep.subr.mxu0 0.0
        %548 = vmatpush2.msra.mxu0 0.0
        %549 = vmatprep.subr.mxu0 0.0
        %550 = vmatpush2.msra.mxu0 0.0
        %551 = vmatprep.subr.mxu0 0.0
        %552 = vmatpush2.msra.mxu0 0.0
        %553 = vmatprep.subr.mxu0 0.0
        %554 = vmatpush2.msra.mxu0 0.0
        %555 = vmatprep.subr.mxu0 0.0
        %556 = vmatpush2.msra.mxu0 0.0
        %557 = vmatprep.subr.mxu0 0.0
        %558 = vmatpush2.msra.mxu0 0.0
        %559 = vmatprep.subr.mxu0 0.0
        %560 = vmatpush2.msra.mxu0 0.0
        %561 = vmatprep.subr.mxu0 0.0
        %562 = vmatpush2.msra.mxu0 0.0
        %563 = vmatprep.subr.mxu0 0.0
        %564 = vmatpush2.msra.mxu0 0.0
        %565 = vmatprep.mubr.f32.mxu0 0.0
        %v566 = vand.u32 %v150, 4294901760
        %567 = vmatmul.mubr.f32.gmra.mxu0 %v566
        %v568 = vpop.f32.mrf.mxu0
        %v569 = vadd.f32 %v484, %v568
        %v570 = vpop.f32.mrf.mxu0
        %571 = vmatprep.mubr.f32.mxu0 0.0
        %v572 = vand.u32 %v153, 4294901760
        %573 = vmatmul.mubr.f32.gmra.mxu0 %v572
        %v574 = vpop.f32.mrf.mxu0
        %v575 = vadd.f32 %v492, %v574
        %v576 = vpop.f32.mrf.mxu0
        %577 = vdwg.mxu0
        %578 = vmatprep.subr.mxu0 0.0
        %579 = vmatpush1.msra.mxu0 0.0
        %580 = vmatprep.subr.mxu0 0.0
        %581 = vmatpush1.msra.mxu0 0.0
        %582 = vmatprep.subr.mxu0 0.0
        %583 = vmatpush1.msra.mxu0 0.0
        %584 = vmatprep.subr.mxu0 0.0
        %585 = vmatpush1.msra.mxu0 0.0
        %586 = vmatprep.subr.mxu0 0.0
        %587 = vmatpush1.msra.mxu0 0.0
        %588 = vmatprep.subr.mxu0 0.0
        %589 = vmatpush1.msra.mxu0 0.0
        %590 = vmatprep.subr.mxu0 0.0
        %591 = vmatpush1.msra.mxu0 0.0
        %592 = vmatprep.subr.mxu0 0.0
        %593 = vmatpush1.msra.mxu0 0.0
        %594 = vmatprep.subr.mxu0 0.0
        %595 = vmatpush1.msra.mxu0 0.0
        %596 = vmatprep.subr.mxu0 0.0
        %597 = vmatpush1.msra.mxu0 0.0
        %598 = vmatprep.subr.mxu0 0.0
        %599 = vmatpush1.msra.mxu0 0.0
        %600 = vmatprep.subr.mxu0 0.0
        %601 = vmatpush1.msra.mxu0 0.0
        %602 = vmatprep.subr.mxu0 0.0
        %603 = vmatpush1.msra.mxu0 0.0
        %604 = vmatprep.subr.mxu0 0.0
        %605 = vmatpush1.msra.mxu0 0.0
        %606 = vmatprep.subr.mxu0 0.0
        %v607 = vand.u32 %v136, 4294901760
        %608 = vmatpush1.msra.mxu0 %v607
        %609 = vmatprep.subr.mxu0 0.0
        %v610 = vand.u32 %v135, 4294901760
        %611 = vmatpush1.msra.mxu0 %v610
        %612 = vmatprep.subr.mxu0 0.0
        %613 = vmatpush2.msra.mxu0 0.0
        %614 = vmatprep.subr.mxu0 0.0
        %615 = vmatpush2.msra.mxu0 0.0
        %616 = vmatprep.subr.mxu0 0.0
        %617 = vmatpush2.msra.mxu0 0.0
        %618 = vmatprep.subr.mxu0 0.0
        %619 = vmatpush2.msra.mxu0 0.0
        %620 = vmatprep.subr.mxu0 0.0
        %621 = vmatpush2.msra.mxu0 0.0
        %622 = vmatprep.subr.mxu0 0.0
        %623 = vmatpush2.msra.mxu0 0.0
        %624 = vmatprep.subr.mxu0 0.0
        %625 = vmatpush2.msra.mxu0 0.0
        %626 = vmatprep.subr.mxu0 0.0
        %627 = vmatpush2.msra.mxu0 0.0
        %628 = vmatprep.subr.mxu0 0.0
        %629 = vmatpush2.msra.mxu0 0.0
        %630 = vmatprep.subr.mxu0 0.0
        %631 = vmatpush2.msra.mxu0 0.0
        %632 = vmatprep.subr.mxu0 0.0
        %633 = vmatpush2.msra.mxu0 0.0
        %634 = vmatprep.subr.mxu0 0.0
        %635 = vmatpush2.msra.mxu0 0.0
        %636 = vmatprep.subr.mxu0 0.0
        %637 = vmatpush2.msra.mxu0 0.0
        %638 = vmatprep.subr.mxu0 0.0
        %639 = vmatpush2.msra.mxu0 0.0
        %640 = vmatprep.subr.mxu0 0.0
        %641 = vmatpush2.msra.mxu0 0.0
        %642 = vmatprep.subr.mxu0 0.0
        %643 = vmatpush2.msra.mxu0 0.0
        %644 = vmatprep.mubr.f32.mxu0 0.0
        %v645 = vand.u32 %v150, 4294901760
        %646 = vmatmul.mubr.f32.gmra.mxu0 %v645
        %v647 = vpop.f32.mrf.mxu0
        %v648 = vadd.f32 %v569, %v647
        %v649 = vpop.f32.mrf.mxu0
        %650 = vmatprep.mubr.f32.mxu0 0.0
        %v651 = vand.u32 %v153, 4294901760
        %652 = vmatmul.mubr.f32.gmra.mxu0 %v651
        %v653 = vpop.f32.mrf.mxu0
        %v654 = vadd.f32 %v575, %v653
        %v655 = vpop.f32.mrf.mxu0
        %656 = vdwg.mxu0
        %vm657 = vcmp.le.s32.totalorder %v138, %v141
        %vm658 = vcmp.le.s32.totalorder %v139, %v141
        %v659 = vsel %vm657, 1, 0
        %v660 = vsel %vm658, 1, 0
        %v661 = vcvt.s32.f32 %v659
        %v662 = vcvt.s32.f32 %v660
        %v664 = vsel %vm148, %v135, 0
        %v667 = vsel %vm148, %v136, 0
        %669 = vmatprep.subr.mxu0 0.0
        %670 = vmatpush1.msra.mxu0 0.0
        %671 = vmatprep.subr.mxu0 0.0
        %672 = vmatpush1.msra.mxu0 0.0
        %673 = vmatprep.subr.mxu0 0.0
        %674 = vmatpush1.msra.mxu0 0.0
        %675 = vmatprep.subr.mxu0 0.0
        %676 = vmatpush1.msra.mxu0 0.0
        %677 = vmatprep.subr.mxu0 0.0
        %678 = vmatpush1.msra.mxu0 0.0
        %679 = vmatprep.subr.mxu0 0.0
        %680 = vmatpush1.msra.mxu0 0.0
        %681 = vmatprep.subr.mxu0 0.0
        %682 = vmatpush1.msra.mxu0 0.0
        %683 = vmatprep.subr.mxu0 0.0
        %684 = vmatpush1.msra.mxu0 0.0
        %685 = vmatprep.subr.mxu0 0.0
        %686 = vmatpush1.msra.mxu0 0.0
        %687 = vmatprep.subr.mxu0 0.0
        %688 = vmatpush1.msra.mxu0 0.0
        %689 = vmatprep.subr.mxu0 0.0
        %690 = vmatpush1.msra.mxu0 0.0
        %691 = vmatprep.subr.mxu0 0.0
        %692 = vmatpush1.msra.mxu0 0.0
        %693 = vmatprep.subr.mxu0 0.0
        %694 = vmatpush1.msra.mxu0 0.0
        %695 = vmatprep.subr.mxu0 0.0
        %696 = vmatpush1.msra.mxu0 0.0
        %697 = vmatprep.subr.mxu0 0.0
        %v698 = vand.u32 %v662, 4294901760
        %699 = vmatpush1.msra.mxu0 %v698
        %700 = vmatprep.subr.mxu0 0.0
        %v701 = vand.u32 %v661, 4294901760
        %702 = vmatpush1.msra.mxu0 %v701
        %703 = vmatprep.subr.mxu0 0.0
        %704 = vmatpush2.msra.mxu0 0.0
        %705 = vmatprep.subr.mxu0 0.0
        %706 = vmatpush2.msra.mxu0 0.0
        %707 = vmatprep.subr.mxu0 0.0
        %708 = vmatpush2.msra.mxu0 0.0
        %709 = vmatprep.subr.mxu0 0.0
        %710 = vmatpush2.msra.mxu0 0.0
        %711 = vmatprep.subr.mxu0 0.0
        %712 = vmatpush2.msra.mxu0 0.0
        %713 = vmatprep.subr.mxu0 0.0
        %714 = vmatpush2.msra.mxu0 0.0
        %715 = vmatprep.subr.mxu0 0.0
        %716 = vmatpush2.msra.mxu0 0.0
        %717 = vmatprep.subr.mxu0 0.0
        %718 = vmatpush2.msra.mxu0 0.0
        %719 = vmatprep.subr.mxu0 0.0
        %720 = vmatpush2.msra.mxu0 0.0
        %721 = vmatprep.subr.mxu0 0.0
        %722 = vmatpush2.msra.mxu0 0.0
        %723 = vmatprep.subr.mxu0 0.0
        %724 = vmatpush2.msra.mxu0 0.0
        %725 = vmatprep.subr.mxu0 0.0
        %726 = vmatpush2.msra.mxu0 0.0
        %727 = vmatprep.subr.mxu0 0.0
        %728 = vmatpush2.msra.mxu0 0.0
        %729 = vmatprep.subr.mxu0 0.0
        %730 = vmatpush2.msra.mxu0 0.0
        %731 = vmatprep.subr.mxu0 0.0
        %732 = vmatpush2.msra.mxu0 0.0
        %733 = vmatprep.subr.mxu0 0.0
        %734 = vmatpush2.msra.mxu0 0.0
        %735 = vmatprep.mubr.f32.mxu0 0.0
        %v736 = vand.u32 %v664, 4294901760
        %v737 = vsub.f32 %v664, %v736
        %v738 = vand.u32 %v737, 4294901760
        %v739 = vsub.f32 %v737, %v738
        %v740 = vand.u32 %v739, 4294901760
        %741 = vmatmul.mubr.f32.gmra.mxu0 %v740
        %v742 = vpop.f32.mrf.mxu0
        %v743 = vadd.f32 0.0, %v742
        %v744 = vpop.f32.mrf.mxu0
        %745 = vmatprep.mubr.f32.mxu0 0.0
        %v746 = vand.u32 %v667, 4294901760
        %v747 = vsub.f32 %v667, %v746
        %v748 = vand.u32 %v747, 4294901760
        %v749 = vsub.f32 %v747, %v748
        %v750 = vand.u32 %v749, 4294901760
        %751 = vmatmul.mubr.f32.gmra.mxu0 %v750
        %v752 = vpop.f32.mrf.mxu0
        %v753 = vadd.f32 0.0, %v752
        %v754 = vpop.f32.mrf.mxu0
        %755 = vdwg.mxu0
        %756 = vmatprep.subr.mxu0 0.0
        %757 = vmatpush1.msra.mxu0 0.0
        %758 = vmatprep.subr.mxu0 0.0
        %759 = vmatpush1.msra.mxu0 0.0
        %760 = vmatprep.subr.mxu0 0.0
        %761 = vmatpush1.msra.mxu0 0.0
        %762 = vmatprep.subr.mxu0 0.0
        %763 = vmatpush1.msra.mxu0 0.0
        %764 = vmatprep.subr.mxu0 0.0
        %765 = vmatpush1.msra.mxu0 0.0
        %766 = vmatprep.subr.mxu0 0.0
        %767 = vmatpush1.msra.mxu0 0.0
        %768 = vmatprep.subr.mxu0 0.0
        %769 = vmatpush1.msra.mxu0 0.0
        %770 = vmatprep.subr.mxu0 0.0
        %771 = vmatpush1.msra.mxu0 0.0
        %772 = vmatprep.subr.mxu0 0.0
        %773 = vmatpush1.msra.mxu0 0.0
        %774 = vmatprep.subr.mxu0 0.0
        %775 = vmatpush1.msra.mxu0 0.0
        %776 = vmatprep.subr.mxu0 0.0
        %777 = vmatpush1.msra.mxu0 0.0
        %778 = vmatprep.subr.mxu0 0.0
        %779 = vmatpush1.msra.mxu0 0.0
        %780 = vmatprep.subr.mxu0 0.0
        %781 = vmatpush1.msra.mxu0 0.0
        %782 = vmatprep.subr.mxu0 0.0
        %783 = vmatpush1.msra.mxu0 0.0
        %784 = vmatprep.subr.mxu0 0.0
        %v785 = vand.u32 %v662, 4294901760
        %v786 = vsub.f32 %v662, %v785
        %v787 = vand.u32 %v786, 4294901760
        %v788 = vsub.f32 %v786, %v787
        %v789 = vand.u32 %v788, 4294901760
        %790 = vmatpush1.msra.mxu0 %v789
        %791 = vmatprep.subr.mxu0 0.0
        %v792 = vand.u32 %v661, 4294901760
        %v793 = vsub.f32 %v661, %v792
        %v794 = vand.u32 %v793, 4294901760
        %v795 = vsub.f32 %v793, %v794
        %v796 = vand.u32 %v795, 4294901760
        %797 = vmatpush1.msra.mxu0 %v796
        %798 = vmatprep.subr.mxu0 0.0
        %799 = vmatpush2.msra.mxu0 0.0
        %800 = vmatprep.subr.mxu0 0.0
        %801 = vmatpush2.msra.mxu0 0.0
        %802 = vmatprep.subr.mxu0 0.0
        %803 = vmatpush2.msra.mxu0 0.0
        %804 = vmatprep.subr.mxu0 0.0
        %805 = vmatpush2.msra.mxu0 0.0
        %806 = vmatprep.subr.mxu0 0.0
        %807 = vmatpush2.msra.mxu0 0.0
        %808 = vmatprep.subr.mxu0 0.0
        %809 = vmatpush2.msra.mxu0 0.0
        %810 = vmatprep.subr.mxu0 0.0
        %811 = vmatpush2.msra.mxu0 0.0
        %812 = vmatprep.subr.mxu0 0.0
        %813 = vmatpush2.msra.mxu0 0.0
        %814 = vmatprep.subr.mxu0 0.0
        %815 = vmatpush2.msra.mxu0 0.0
        %816 = vmatprep.subr.mxu0 0.0
        %817 = vmatpush2.msra.mxu0 0.0
        %818 = vmatprep.subr.mxu0 0.0
        %819 = vmatpush2.msra.mxu0 0.0
        %820 = vmatprep.subr.mxu0 0.0
        %821 = vmatpush2.msra.mxu0 0.0
        %822 = vmatprep.subr.mxu0 0.0
        %823 = vmatpush2.msra.mxu0 0.0
        %824 = vmatprep.subr.mxu0 0.0
        %825 = vmatpush2.msra.mxu0 0.0
        %826 = vmatprep.subr.mxu0 0.0
        %827 = vmatpush2.msra.mxu0 0.0
        %828 = vmatprep.subr.mxu0 0.0
        %829 = vmatpush2.msra.mxu0 0.0
        %830 = vmatprep.mubr.f32.mxu0 0.0
        %v831 = vand.u32 %v664, 4294901760
        %832 = vmatmul.mubr.f32.gmra.mxu0 %v831
        %v833 = vpop.f32.mrf.mxu0
        %v834 = vadd.f32 %v743, %v833
        %v835 = vpop.f32.mrf.mxu0
        %836 = vmatprep.mubr.f32.mxu0 0.0
        %v837 = vand.u32 %v667, 4294901760
        %838 = vmatmul.mubr.f32.gmra.mxu0 %v837
        %v839 = vpop.f32.mrf.mxu0
        %v840 = vadd.f32 %v753, %v839
        %v841 = vpop.f32.mrf.mxu0
        %842 = vdwg.mxu0
        %843 = vmatprep.subr.mxu0 0.0
        %844 = vmatpush1.msra.mxu0 0.0
        %845 = vmatprep.subr.mxu0 0.0
        %846 = vmatpush1.msra.mxu0 0.0
        %847 = vmatprep.subr.mxu0 0.0
        %848 = vmatpush1.msra.mxu0 0.0
        %849 = vmatprep.subr.mxu0 0.0
        %850 = vmatpush1.msra.mxu0 0.0
        %851 = vmatprep.subr.mxu0 0.0
        %852 = vmatpush1.msra.mxu0 0.0
        %853 = vmatprep.subr.mxu0 0.0
        %854 = vmatpush1.msra.mxu0 0.0
        %855 = vmatprep.subr.mxu0 0.0
        %856 = vmatpush1.msra.mxu0 0.0
        %857 = vmatprep.subr.mxu0 0.0
        %858 = vmatpush1.msra.mxu0 0.0
        %859 = vmatprep.subr.mxu0 0.0
        %860 = vmatpush1.msra.mxu0 0.0
        %861 = vmatprep.subr.mxu0 0.0
        %862 = vmatpush1.msra.mxu0 0.0
        %863 = vmatprep.subr.mxu0 0.0
        %864 = vmatpush1.msra.mxu0 0.0
        %865 = vmatprep.subr.mxu0 0.0
        %866 = vmatpush1.msra.mxu0 0.0
        %867 = vmatprep.subr.mxu0 0.0
        %868 = vmatpush1.msra.mxu0 0.0
        %869 = vmatprep.subr.mxu0 0.0
        %870 = vmatpush1.msra.mxu0 0.0
        %871 = vmatprep.subr.mxu0 0.0
        %v872 = vand.u32 %v662, 4294901760
        %v873 = vsub.f32 %v662, %v872
        %874 = vmatpush1.msra.mxu0 %v873
        %875 = vmatprep.subr.mxu0 0.0
        %v876 = vand.u32 %v661, 4294901760
        %v877 = vsub.f32 %v661, %v876
        %878 = vmatpush1.msra.mxu0 %v877
        %879 = vmatprep.subr.mxu0 0.0
        %880 = vmatpush2.msra.mxu0 0.0
        %881 = vmatprep.subr.mxu0 0.0
        %882 = vmatpush2.msra.mxu0 0.0
        %883 = vmatprep.subr.mxu0 0.0
        %884 = vmatpush2.msra.mxu0 0.0
        %885 = vmatprep.subr.mxu0 0.0
        %886 = vmatpush2.msra.mxu0 0.0
        %887 = vmatprep.subr.mxu0 0.0
        %888 = vmatpush2.msra.mxu0 0.0
        %889 = vmatprep.subr.mxu0 0.0
        %890 = vmatpush2.msra.mxu0 0.0
        %891 = vmatprep.subr.mxu0 0.0
        %892 = vmatpush2.msra.mxu0 0.0
        %893 = vmatprep.subr.mxu0 0.0
        %894 = vmatpush2.msra.mxu0 0.0
        %895 = vmatprep.subr.mxu0 0.0
        %896 = vmatpush2.msra.mxu0 0.0
        %897 = vmatprep.subr.mxu0 0.0
        %898 = vmatpush2.msra.mxu0 0.0
        %899 = vmatprep.subr.mxu0 0.0
        %900 = vmatpush2.msra.mxu0 0.0
        %901 = vmatprep.subr.mxu0 0.0
        %902 = vmatpush2.msra.mxu0 0.0
        %903 = vmatprep.subr.mxu0 0.0
        %904 = vmatpush2.msra.mxu0 0.0
        %905 = vmatprep.subr.mxu0 0.0
        %906 = vmatpush2.msra.mxu0 0.0
        %907 = vmatprep.subr.mxu0 0.0
        %908 = vmatpush2.msra.mxu0 0.0
        %909 = vmatprep.subr.mxu0 0.0
        %910 = vmatpush2.msra.mxu0 0.0
        %911 = vmatprep.mubr.f32.mxu0 0.0
        %v912 = vand.u32 %v664, 4294901760
        %v913 = vsub.f32 %v664, %v912
        %914 = vmatmul.mubr.f32.gmra.mxu0 %v913
        %v915 = vpop.f32.mrf.mxu0
        %v916 = vadd.f32 %v834, %v915
        %v917 = vpop.f32.mrf.mxu0
        %918 = vmatprep.mubr.f32.mxu0 0.0
        %v919 = vand.u32 %v667, 4294901760
        %v920 = vsub.f32 %v667, %v919
        %921 = vmatmul.mubr.f32.gmra.mxu0 %v920
        %v922 = vpop.f32.mrf.mxu0
        %v923 = vadd.f32 %v840, %v922
        %v924 = vpop.f32.mrf.mxu0
        %925 = vdwg.mxu0
        %926 = vmatprep.subr.mxu0 0.0
        %927 = vmatpush1.msra.mxu0 0.0
        %928 = vmatprep.subr.mxu0 0.0
        %929 = vmatpush1.msra.mxu0 0.0
        %930 = vmatprep.subr.mxu0 0.0
        %931 = vmatpush1.msra.mxu0 0.0
        %932 = vmatprep.subr.mxu0 0.0
        %933 = vmatpush1.msra.mxu0 0.0
        %934 = vmatprep.subr.mxu0 0.0
        %935 = vmatpush1.msra.mxu0 0.0
        %936 = vmatprep.subr.mxu0 0.0
        %937 = vmatpush1.msra.mxu0 0.0
        %938 = vmatprep.subr.mxu0 0.0
        %939 = vmatpush1.msra.mxu0 0.0
        %940 = vmatprep.subr.mxu0 0.0
        %941 = vmatpush1.msra.mxu0 0.0
        %942 = vmatprep.subr.mxu0 0.0
        %943 = vmatpush1.msra.mxu0 0.0
        %944 = vmatprep.subr.mxu0 0.0
        %945 = vmatpush1.msra.mxu0 0.0
        %946 = vmatprep.subr.mxu0 0.0
        %947 = vmatpush1.msra.mxu0 0.0
        %948 = vmatprep.subr.mxu0 0.0
        %949 = vmatpush1.msra.mxu0 0.0
        %950 = vmatprep.subr.mxu0 0.0
        %951 = vmatpush1.msra.mxu0 0.0
        %952 = vmatprep.subr.mxu0 0.0
        %953 = vmatpush1.msra.mxu0 0.0
        %954 = vmatprep.subr.mxu0 0.0
        %v955 = vand.u32 %v662, 4294901760
        %956 = vmatpush1.msra.mxu0 %v955
        %957 = vmatprep.subr.mxu0 0.0
        %v958 = vand.u32 %v661, 4294901760
        %959 = vmatpush1.msra.mxu0 %v958
        %960 = vmatprep.subr.mxu0 0.0
        %961 = vmatpush2.msra.mxu0 0.0
        %962 = vmatprep.subr.mxu0 0.0
        %963 = vmatpush2.msra.mxu0 0.0
        %964 = vmatprep.subr.mxu0 0.0
        %965 = vmatpush2.msra.mxu0 0.0
        %966 = vmatprep.subr.mxu0 0.0
        %967 = vmatpush2.msra.mxu0 0.0
        %968 = vmatprep.subr.mxu0 0.0
        %969 = vmatpush2.msra.mxu0 0.0
        %970 = vmatprep.subr.mxu0 0.0
        %971 = vmatpush2.msra.mxu0 0.0
        %972 = vmatprep.subr.mxu0 0.0
        %973 = vmatpush2.msra.mxu0 0.0
        %974 = vmatprep.subr.mxu0 0.0
        %975 = vmatpush2.msra.mxu0 0.0
        %976 = vmatprep.subr.mxu0 0.0
        %977 = vmatpush2.msra.mxu0 0.0
        %978 = vmatprep.subr.mxu0 0.0
        %979 = vmatpush2.msra.mxu0 0.0
        %980 = vmatprep.subr.mxu0 0.0
        %981 = vmatpush2.msra.mxu0 0.0
        %982 = vmatprep.subr.mxu0 0.0
        %983 = vmatpush2.msra.mxu0 0.0
        %984 = vmatprep.subr.mxu0 0.0
        %985 = vmatpush2.msra.mxu0 0.0
        %986 = vmatprep.subr.mxu0 0.0
        %987 = vmatpush2.msra.mxu0 0.0
        %988 = vmatprep.subr.mxu0 0.0
        %989 = vmatpush2.msra.mxu0 0.0
        %990 = vmatprep.subr.mxu0 0.0
        %991 = vmatpush2.msra.mxu0 0.0
        %992 = vmatprep.mubr.f32.mxu0 0.0
        %v993 = vand.u32 %v664, 4294901760
        %v994 = vsub.f32 %v664, %v993
        %v995 = vand.u32 %v994, 4294901760
        %996 = vmatmul.mubr.f32.gmra.mxu0 %v995
        %v997 = vpop.f32.mrf.mxu0
        %v998 = vadd.f32 %v916, %v997
        %v999 = vpop.f32.mrf.mxu0
        %1000 = vmatprep.mubr.f32.mxu0 0.0
        %v1001 = vand.u32 %v667, 4294901760
        %v1002 = vsub.f32 %v667, %v1001
        %v1003 = vand.u32 %v1002, 4294901760
        %1004 = vmatmul.mubr.f32.gmra.mxu0 %v1003
        %v1005 = vpop.f32.mrf.mxu0
        %v1006 = vadd.f32 %v923, %v1005
        %v1007 = vpop.f32.mrf.mxu0
        %1008 = vdwg.mxu0
        %1009 = vmatprep.subr.mxu0 0.0
        %1010 = vmatpush1.msra.mxu0 0.0
        %1011 = vmatprep.subr.mxu0 0.0
        %1012 = vmatpush1.msra.mxu0 0.0
        %1013 = vmatprep.subr.mxu0 0.0
        %1014 = vmatpush1.msra.mxu0 0.0
        %1015 = vmatprep.subr.mxu0 0.0
        %1016 = vmatpush1.msra.mxu0 0.0
        %1017 = vmatprep.subr.mxu0 0.0
        %1018 = vmatpush1.msra.mxu0 0.0
        %1019 = vmatprep.subr.mxu0 0.0
        %1020 = vmatpush1.msra.mxu0 0.0
        %1021 = vmatprep.subr.mxu0 0.0
        %1022 = vmatpush1.msra.mxu0 0.0
        %1023 = vmatprep.subr.mxu0 0.0
        %1024 = vmatpush1.msra.mxu0 0.0
        %1025 = vmatprep.subr.mxu0 0.0
        %1026 = vmatpush1.msra.mxu0 0.0
        %1027 = vmatprep.subr.mxu0 0.0
        %1028 = vmatpush1.msra.mxu0 0.0
        %1029 = vmatprep.subr.mxu0 0.0
        %1030 = vmatpush1.msra.mxu0 0.0
        %1031 = vmatprep.subr.mxu0 0.0
        %1032 = vmatpush1.msra.mxu0 0.0
        %1033 = vmatprep.subr.mxu0 0.0
        %1034 = vmatpush1.msra.mxu0 0.0
        %1035 = vmatprep.subr.mxu0 0.0
        %1036 = vmatpush1.msra.mxu0 0.0
        %1037 = vmatprep.subr.mxu0 0.0
        %v1038 = vand.u32 %v662, 4294901760
        %v1039 = vsub.f32 %v662, %v1038
        %v1040 = vand.u32 %v1039, 4294901760
        %1041 = vmatpush1.msra.mxu0 %v1040
        %1042 = vmatprep.subr.mxu0 0.0
        %v1043 = vand.u32 %v661, 4294901760
        %v1044 = vsub.f32 %v661, %v1043
        %v1045 = vand.u32 %v1044, 4294901760
        %1046 = vmatpush1.msra.mxu0 %v1045
        %1047 = vmatprep.subr.mxu0 0.0
        %1048 = vmatpush2.msra.mxu0 0.0
        %1049 = vmatprep.subr.mxu0 0.0
        %1050 = vmatpush2.msra.mxu0 0.0
        %1051 = vmatprep.subr.mxu0 0.0
        %1052 = vmatpush2.msra.mxu0 0.0
        %1053 = vmatprep.subr.mxu0 0.0
        %1054 = vmatpush2.msra.mxu0 0.0
        %1055 = vmatprep.subr.mxu0 0.0
        %1056 = vmatpush2.msra.mxu0 0.0
        %1057 = vmatprep.subr.mxu0 0.0
        %1058 = vmatpush2.msra.mxu0 0.0
        %1059 = vmatprep.subr.mxu0 0.0
        %1060 = vmatpush2.msra.mxu0 0.0
        %1061 = vmatprep.subr.mxu0 0.0
        %1062 = vmatpush2.msra.mxu0 0.0
        %1063 = vmatprep.subr.mxu0 0.0
        %1064 = vmatpush2.msra.mxu0 0.0
        %1065 = vmatprep.subr.mxu0 0.0
        %1066 = vmatpush2.msra.mxu0 0.0
        %1067 = vmatprep.subr.mxu0 0.0
        %1068 = vmatpush2.msra.mxu0 0.0
        %1069 = vmatprep.subr.mxu0 0.0
        %1070 = vmatpush2.msra.mxu0 0.0
        %1071 = vmatprep.subr.mxu0 0.0
        %1072 = vmatpush2.msra.mxu0 0.0
        %1073 = vmatprep.subr.mxu0 0.0
        %1074 = vmatpush2.msra.mxu0 0.0
        %1075 = vmatprep.subr.mxu0 0.0
        %1076 = vmatpush2.msra.mxu0 0.0
        %1077 = vmatprep.subr.mxu0 0.0
        %1078 = vmatpush2.msra.mxu0 0.0
        %1079 = vmatprep.mubr.f32.mxu0 0.0
        %v1080 = vand.u32 %v664, 4294901760
        %1081 = vmatmul.mubr.f32.gmra.mxu0 %v1080
        %v1082 = vpop.f32.mrf.mxu0
        %v1083 = vadd.f32 %v998, %v1082
        %v1084 = vpop.f32.mrf.mxu0
        %1085 = vmatprep.mubr.f32.mxu0 0.0
        %v1086 = vand.u32 %v667, 4294901760
        %1087 = vmatmul.mubr.f32.gmra.mxu0 %v1086
        %v1088 = vpop.f32.mrf.mxu0
        %v1089 = vadd.f32 %v1006, %v1088
        %v1090 = vpop.f32.mrf.mxu0
        %1091 = vdwg.mxu0
        %1092 = vmatprep.subr.mxu0 0.0
        %1093 = vmatpush1.msra.mxu0 0.0
        %1094 = vmatprep.subr.mxu0 0.0
        %1095 = vmatpush1.msra.mxu0 0.0
        %1096 = vmatprep.subr.mxu0 0.0
        %1097 = vmatpush1.msra.mxu0 0.0
        %1098 = vmatprep.subr.mxu0 0.0
        %1099 = vmatpush1.msra.mxu0 0.0
        %1100 = vmatprep.subr.mxu0 0.0
        %1101 = vmatpush1.msra.mxu0 0.0
        %1102 = vmatprep.subr.mxu0 0.0
        %1103 = vmatpush1.msra.mxu0 0.0
        %1104 = vmatprep.subr.mxu0 0.0
        %1105 = vmatpush1.msra.mxu0 0.0
        %1106 = vmatprep.subr.mxu0 0.0
        %1107 = vmatpush1.msra.mxu0 0.0
        %1108 = vmatprep.subr.mxu0 0.0
        %1109 = vmatpush1.msra.mxu0 0.0
        %1110 = vmatprep.subr.mxu0 0.0
        %1111 = vmatpush1.msra.mxu0 0.0
        %1112 = vmatprep.subr.mxu0 0.0
        %1113 = vmatpush1.msra.mxu0 0.0
        %1114 = vmatprep.subr.mxu0 0.0
        %1115 = vmatpush1.msra.mxu0 0.0
        %1116 = vmatprep.subr.mxu0 0.0
        %1117 = vmatpush1.msra.mxu0 0.0
        %1118 = vmatprep.subr.mxu0 0.0
        %1119 = vmatpush1.msra.mxu0 0.0
        %1120 = vmatprep.subr.mxu0 0.0
        %v1121 = vand.u32 %v662, 4294901760
        %1122 = vmatpush1.msra.mxu0 %v1121
        %1123 = vmatprep.subr.mxu0 0.0
        %v1124 = vand.u32 %v661, 4294901760
        %1125 = vmatpush1.msra.mxu0 %v1124
        %1126 = vmatprep.subr.mxu0 0.0
        %1127 = vmatpush2.msra.mxu0 0.0
        %1128 = vmatprep.subr.mxu0 0.0
        %1129 = vmatpush2.msra.mxu0 0.0
        %1130 = vmatprep.subr.mxu0 0.0
        %1131 = vmatpush2.msra.mxu0 0.0
        %1132 = vmatprep.subr.mxu0 0.0
        %1133 = vmatpush2.msra.mxu0 0.0
        %1134 = vmatprep.subr.mxu0 0.0
        %1135 = vmatpush2.msra.mxu0 0.0
        %1136 = vmatprep.subr.mxu0 0.0
        %1137 = vmatpush2.msra.mxu0 0.0
        %1138 = vmatprep.subr.mxu0 0.0
        %1139 = vmatpush2.msra.mxu0 0.0
        %1140 = vmatprep.subr.mxu0 0.0
        %1141 = vmatpush2.msra.mxu0 0.0
        %1142 = vmatprep.subr.mxu0 0.0
        %1143 = vmatpush2.msra.mxu0 0.0
        %1144 = vmatprep.subr.mxu0 0.0
        %1145 = vmatpush2.msra.mxu0 0.0
        %1146 = vmatprep.subr.mxu0 0.0
        %1147 = vmatpush2.msra.mxu0 0.0
        %1148 = vmatprep.subr.mxu0 0.0
        %1149 = vmatpush2.msra.mxu0 0.0
        %1150 = vmatprep.subr.mxu0 0.0
        %1151 = vmatpush2.msra.mxu0 0.0
        %1152 = vmatprep.subr.mxu0 0.0
        %1153 = vmatpush2.msra.mxu0 0.0
        %1154 = vmatprep.subr.mxu0 0.0
        %1155 = vmatpush2.msra.mxu0 0.0
        %1156 = vmatprep.subr.mxu0 0.0
        %1157 = vmatpush2.msra.mxu0 0.0
        %1158 = vmatprep.mubr.f32.mxu0 0.0
        %v1159 = vand.u32 %v664, 4294901760
        %1160 = vmatmul.mubr.f32.gmra.mxu0 %v1159
        %v1161 = vpop.f32.mrf.mxu0
        %v1162 = vadd.f32 %v1083, %v1161
        %v1163 = vpop.f32.mrf.mxu0
        %1164 = vmatprep.mubr.f32.mxu0 0.0
        %v1165 = vand.u32 %v667, 4294901760
        %1166 = vmatmul.mubr.f32.gmra.mxu0 %v1165
        %v1167 = vpop.f32.mrf.mxu0
        %v1168 = vadd.f32 %v1089, %v1167
        %v1169 = vpop.f32.mrf.mxu0
        %1170 = vdwg.mxu0
        %1171 = vst.msk [vmem:[%s134] sm:$0xff] %vm148, %v648
        %1172 = vst.msk [vmem:[%s134 + $0x8] sm:$0xff] %vm148, %v654
        %s1173 = scalar_lea.vmem %s134, 16 [#allocation5]
        %1174 = vst.msk [vmem:[%s1173] sm:$0xff] %vm148, %v1162
        %1175 = vst.msk [vmem:[%s1173 + $0x8] sm:$0xff] %vm148, %v1168
        %s1176 = sand.u32 %s52, 1
        %s1177 = scalar_lea.sflag [#allocation4], %s1176
        %s1178 = sand.u32 %s52, 1
        %s1179 = smul.addr %s1178, 32
        %s1180 = scalar_lea.vmem [#allocation5], %s1179
        // Predicated region
        $region29: #{tpu_custom_call.1} parent=23 // pred_check
          %p1181 = pneg %p62
        $region30: #{tpu_custom_call.1} parent=23 // pred_check_branch
          %1183 = sbr.rel (%p1181) target = $region32
        $region31: #{tpu_custom_call.1} parent=23 // pred_region
          %s1185 = ssub.s32 512, 512
          %1186 = vsyncadd %s1177, %s1185
          %s1187 = smul.addr %s18, 4
          %s1188 = smul.addr %s1187, 128
          %s1189 = scalar_lea.hbm %s1, %s1188
          %s1190 = sshll.u32 %s1180, 4
          %s1191 = int_to_ptr.vmem [resolvable:$true] %s1190
          %1196 = dma.vmem_to_hbm [thread:$0]  %s1191, 512, %s1189, %s1177, 128, 128, 8
        $region32: #{tpu_custom_call.1} parent=23 // pred_fallthru
          _
      $region24: #{tpu_custom_call.1} parent=5 // pred_fallthru
        _
      %p1197 = scmp.le.s32.totalorder 2, %s13
      // Predicated region
      $region33: #{tpu_custom_call.1} parent=5 // pred_check
        %p1198 = pneg %p1197
      $region34: #{tpu_custom_call.1} parent=5 // pred_check_branch
        %1200 = sbr.rel (%p1198) target = $region36
      $region35: #{tpu_custom_call.1} parent=5 // pred_region
        %s1201 = ssub.s32 %s13, 2
        // Predicated region
        $region37: #{tpu_custom_call.1} parent=35 // pred_check
          %p1202 = pneg %p68
        $region38: #{tpu_custom_call.1} parent=35 // pred_check_branch
          %1204 = sbr.rel (%p1202) target = $region40
        $region39: #{tpu_custom_call.1} parent=35 // pred_region
          %s1205 = sand.u32 %s53, 1
          %s1206 = scalar_lea.sflag [#allocation4], %s1205
          %s1207 = sand.u32 %s53, 1
          %s1208 = smul.addr %s1207, 32
          %s1209 = scalar_lea.vmem [#allocation5], %s1208
          %1210 = dma.done %s1206, 512
        $region40: #{tpu_custom_call.1} parent=35 // pred_fallthru
          _
      $region36: #{tpu_custom_call.1} parent=5 // pred_fallthru
        _
    $region6: #{tpu_custom_call.1} parent=1 // loop_footer
      %s17 = sadd.s32 1, %s13
    $region7: #{tpu_custom_call.1} parent=1 // loop_footer_branch
      %12 = sbr.rel target = $region3
    $region8: #{tpu_custom_call.1} parent=1 // loop_exit
      _
    %1211 = vsyncpa [#allocation3], 1
    %s1212 = scalar_lea.sflag [#allocation3], 1
    %1213 = vsyncpa %s1212, 1
    %1214 = vsyncpa [#allocation4], 1
    %s1215 = scalar_lea.sflag [#allocation4], 1
    %1216 = vsyncpa %s1215, 1

</llo_original>
